<compile_context>
chip_gen: v7x
topology: tpu7x:2x2x1
jax: 0.10.0
libtpu: 0.0.40
codegen_flags: <defaults>
</compile_context>

<pallas_src>
import math

import jax
import jax.numpy as jnp
from jax.experimental import pallas as pl
from jax.experimental.pallas import tpu as pltpu


STATE_SIZE = 4     # CartPole-v1 observation dim
ACTION_SIZE = 2    # CartPole-v1 action count
HIDDEN = 64
LANES = 128        # lane-dense padded output width
TILE_B = 128       # batch rows per grid step


def qnetwork_kernel(x_ref, w1_ref, b1_ref, w2_ref, b2_ref, w3_ref, b3_ref, out_ref):
    # ---- fc1 + relu, on the VPU (K = 4 is far too shallow for the MXU) ----
    x = x_ref[...]                    # (TILE_B, 4)  f32
    w1 = w1_ref[...]                  # (4, 64)      f32
    acc = b1_ref[...]                 # (1, 64) -> broadcasts over sublanes
    for k in range(STATE_SIZE):       # static unroll: 4 broadcast mul-adds
        acc = acc + x[:, k:k + 1] * w1[k:k + 1, :]
    h1 = jnp.maximum(acc, 0.0)        # (TILE_B, 64) f32

    # ---- fc2 + relu: MXU, bf16 operands, f32 accumulation ----
    h2 = jnp.dot(h1.astype(jnp.bfloat16), w2_ref[...],
                 preferred_element_type=jnp.float32)
    h2 = jnp.maximum(h2 + b2_ref[...], 0.0)

    # ---- fc3 (output padded 2 -> 128 lanes => lane-dense, unmasked store) ----
    q = jnp.dot(h2.astype(jnp.bfloat16), w3_ref[...],
                preferred_element_type=jnp.float32)
    out_ref[...] = q + b3_ref[...]    # (TILE_B, 128) f32


def prepare_kernel_params(params):
    """Logical (in, out)-layout f32 params -> kernel layout (bf16 MXU weights,
    fc3 zero-padded to 128 output lanes)."""
    w1, b1, w2, b2, w3, b3 = params
    w3p = jnp.zeros((HIDDEN, LANES), jnp.float32).at[:, :ACTION_SIZE].set(w3)
    b3p = jnp.zeros((1, LANES), jnp.float32).at[:, :ACTION_SIZE].set(b3)
    return (w1.astype(jnp.float32), b1.astype(jnp.float32),
            w2.astype(jnp.bfloat16), b2.astype(jnp.float32),
            w3p.astype(jnp.bfloat16), b3p.astype(jnp.float32))


@jax.jit
def qnetwork_forward(x, params):
    """Fused MLP forward; x: (B, STATE_SIZE) f32 -> (B, ACTION_SIZE) f32."""
    w1, b1, w2, b2, w3p, b3p = prepare_kernel_params(params)
    B = x.shape[0]
    n_tiles = pl.cdiv(B, TILE_B)
    b_pad = n_tiles * TILE_B
    x_pad = jnp.pad(x.astype(jnp.float32), ((0, b_pad - B), (0, 0)))

    const = lambda i: (0, 0)          # weights / biases: same block every step
    out = pl.pallas_call(
        qnetwork_kernel,
        out_shape=jax.ShapeDtypeStruct((b_pad, LANES), jnp.float32),
        grid=(n_tiles,),
        in_specs=[
            pl.BlockSpec((TILE_B, STATE_SIZE), lambda i: (i, 0)),   # x
            pl.BlockSpec((STATE_SIZE, HIDDEN), const),              # w1
            pl.BlockSpec((1, HIDDEN), const),                       # b1
            pl.BlockSpec((HIDDEN, HIDDEN), const),                  # w2 (bf16)
            pl.BlockSpec((1, HIDDEN), const),                       # b2
            pl.BlockSpec((HIDDEN, LANES), const),                   # w3 padded (bf16)
            pl.BlockSpec((1, LANES), const),                        # b3 padded
        ],
        out_specs=pl.BlockSpec((TILE_B, LANES), lambda i: (i, 0)),
        compiler_params=pltpu.CompilerParams(
            dimension_semantics=("parallel",)),   # v7x: shard batch over 2 TCs
    )(x_pad, w1, b1, w2, b2, w3p, b3p)

    return out[:B, :ACTION_SIZE]


def init_params(key):
    """Deterministic init mimicking nn.Linear's default U(-1/sqrt(fan_in), +)."""
    def linear(key, fan_in, fan_out):
        kw, kb = jax.random.split(key)
        bound = 1.0 / math.sqrt(fan_in)
        # stored as (in, out) so the kernel computes x @ W
        w = jax.random.uniform(kw, (fan_in, fan_out), jnp.float32, -bound, bound)
        b = jax.random.uniform(kb, (1, fan_out), jnp.float32, -bound, bound)
        return w, b

    k1, k2, k3 = jax.random.split(key, 3)
    w1, b1 = linear(k1, STATE_SIZE, HIDDEN)
    w2, b2 = linear(k2, HIDDEN, HIDDEN)
    w3, b3 = linear(k3, HIDDEN, ACTION_SIZE)
    return (w1, b1, w2, b2, w3, b3)


def qnetwork_ref(x, params):
    """Pure-f32 JAX reference mirroring the torch forward exactly."""
    w1, b1, w2, b2, w3, b3 = params
    h = jnp.maximum(x @ w1 + b1, 0.0)
    h = jnp.maximum(h @ w2 + b2, 0.0)
    return h @ w3 + b3


def qnetwork_ref_kernel_numerics(x, params):
    """Reference with the same bf16 matmul operands the kernel uses."""
    w1, b1, w2, b2, w3, b3 = params
    h = jnp.maximum(x @ w1 + b1, 0.0)
    h = jnp.dot(h.astype(jnp.bfloat16), w2.astype(jnp.bfloat16),
                preferred_element_type=jnp.float32) + b2
    h = jnp.maximum(h, 0.0)
    return jnp.dot(h.astype(jnp.bfloat16), w3.astype(jnp.bfloat16),
                   preferred_element_type=jnp.float32) + b3


if __name__ == "__main__":
    key = jax.random.PRNGKey(0)
    kp, kx = jax.random.split(key)

    params = init_params(kp)
    batch = 8
    x = jax.random.normal(kx, (batch, STATE_SIZE), jnp.float32)

    q = qnetwork_forward(x, params)
    jax.block_until_ready(q)
    assert q.shape == (batch, ACTION_SIZE)

    # Exact-numerics check (kernel's bf16 operand path) — tight tolerance.
    q_match = qnetwork_ref_kernel_numerics(x, params)
    assert jnp.allclose(q, q_match, atol=1e-3, rtol=1e-3), \
        float(jnp.max(jnp.abs(q - q_match)))

    # Sanity check vs. the pure-f32 torch-equivalent forward — bf16 tolerance.
    q_f32 = qnetwork_ref(x, params)
    assert jnp.allclose(q, q_f32, atol=5e-2, rtol=5e-2), \
        float(jnp.max(jnp.abs(q - q_f32)))

    print("KERNEL_OK")
</pallas_src>

<mosaic_0001>
module attributes {stable_mosaic.version = 11 : i64} {
  func.func @qnetwork_kernel(%arg0: i32, %arg1: memref<128x4xf32, #tpu.memory_space<vmem>>, %arg2: memref<4x64xf32, #tpu.memory_space<vmem>>, %arg3: memref<1x64xf32, #tpu.memory_space<vmem>>, %arg4: memref<64x64xbf16, #tpu.memory_space<vmem>>, %arg5: memref<1x64xf32, #tpu.memory_space<vmem>>, %arg6: memref<64x128xbf16, #tpu.memory_space<vmem>>, %arg7: memref<1x128xf32, #tpu.memory_space<vmem>>, %arg8: memref<128x128xf32, #tpu.memory_space<vmem>>) attributes {dimension_semantics = [#tpu.dimension_semantics<parallel>], iteration_bounds = array<i64: 1>, scalar_prefetch = 0 : i64, scratch_operands = 0 : i64, tpu.core_type = #tpu.core_type<tc>, window_params = [{transform_indices = @transform_0, window_bounds = array<i64: 128, 4>}, {pipeline_mode = #tpu.pipeline_mode<synchronous>, transform_indices = @transform_1, window_bounds = array<i64: 4, 64>}, {pipeline_mode = #tpu.pipeline_mode<synchronous>, transform_indices = @transform_2, window_bounds = array<i64: 1, 64>}, {pipeline_mode = #tpu.pipeline_mode<synchronous>, transform_indices = @transform_3, window_bounds = array<i64: 64, 64>}, {pipeline_mode = #tpu.pipeline_mode<synchronous>, transform_indices = @transform_4, window_bounds = array<i64: 1, 64>}, {pipeline_mode = #tpu.pipeline_mode<synchronous>, transform_indices = @transform_5, window_bounds = array<i64: 64, 128>}, {pipeline_mode = #tpu.pipeline_mode<synchronous>, transform_indices = @transform_6, window_bounds = array<i64: 1, 128>}, {transform_indices = @transform_7, window_bounds = array<i64: 128, 128>}]} {
    %c0 = arith.constant 0 : index
    %c0_0 = arith.constant 0 : index
    %0 = vector.load %arg1[%c0, %c0_0] : memref<128x4xf32, #tpu.memory_space<vmem>>, vector<128x4xf32>
    %c0_1 = arith.constant 0 : index
    %c0_2 = arith.constant 0 : index
    %1 = vector.load %arg2[%c0_1, %c0_2] : memref<4x64xf32, #tpu.memory_space<vmem>>, vector<4x64xf32>
    %c0_3 = arith.constant 0 : index
    %c0_4 = arith.constant 0 : index
    %2 = vector.load %arg3[%c0_3, %c0_4] : memref<1x64xf32, #tpu.memory_space<vmem>>, vector<1x64xf32>
    %3 = vector.extract_strided_slice %0 {offsets = [0, 0], sizes = [128, 1], strides = [1, 1]} : vector<128x4xf32> to vector<128x1xf32>
    %4 = vector.extract_strided_slice %1 {offsets = [0, 0], sizes = [1, 64], strides = [1, 1]} : vector<4x64xf32> to vector<1x64xf32>
    %5 = vector.broadcast %3 : vector<128x1xf32> to vector<128x64xf32>
    %6 = vector.broadcast %4 : vector<1x64xf32> to vector<128x64xf32>
    %7 = arith.mulf %5, %6 : vector<128x64xf32>
    %8 = vector.broadcast %2 : vector<1x64xf32> to vector<128x64xf32>
    %9 = arith.addf %8, %7 : vector<128x64xf32>
    %10 = vector.extract_strided_slice %0 {offsets = [0, 1], sizes = [128, 1], strides = [1, 1]} : vector<128x4xf32> to vector<128x1xf32>
    %11 = vector.extract_strided_slice %1 {offsets = [1, 0], sizes = [1, 64], strides = [1, 1]} : vector<4x64xf32> to vector<1x64xf32>
    %12 = vector.broadcast %10 : vector<128x1xf32> to vector<128x64xf32>
    %13 = vector.broadcast %11 : vector<1x64xf32> to vector<128x64xf32>
    %14 = arith.mulf %12, %13 : vector<128x64xf32>
    %15 = arith.addf %9, %14 : vector<128x64xf32>
    %16 = vector.extract_strided_slice %0 {offsets = [0, 2], sizes = [128, 1], strides = [1, 1]} : vector<128x4xf32> to vector<128x1xf32>
    %17 = vector.extract_strided_slice %1 {offsets = [2, 0], sizes = [1, 64], strides = [1, 1]} : vector<4x64xf32> to vector<1x64xf32>
    %18 = vector.broadcast %16 : vector<128x1xf32> to vector<128x64xf32>
    %19 = vector.broadcast %17 : vector<1x64xf32> to vector<128x64xf32>
    %20 = arith.mulf %18, %19 : vector<128x64xf32>
    %21 = arith.addf %15, %20 : vector<128x64xf32>
    %22 = vector.extract_strided_slice %0 {offsets = [0, 3], sizes = [128, 1], strides = [1, 1]} : vector<128x4xf32> to vector<128x1xf32>
    %23 = vector.extract_strided_slice %1 {offsets = [3, 0], sizes = [1, 64], strides = [1, 1]} : vector<4x64xf32> to vector<1x64xf32>
    %24 = vector.broadcast %22 : vector<128x1xf32> to vector<128x64xf32>
    %25 = vector.broadcast %23 : vector<1x64xf32> to vector<128x64xf32>
    %26 = arith.mulf %24, %25 : vector<128x64xf32>
    %27 = arith.addf %21, %26 : vector<128x64xf32>
    %cst = arith.constant 0.000000e+00 : f32
    %28 = vector.broadcast %cst : f32 to vector<128x64xf32>
    %29 = arith.maximumf %27, %28 : vector<128x64xf32>
    %30 = arith.truncf %29 : vector<128x64xf32> to vector<128x64xbf16>
    %c0_5 = arith.constant 0 : index
    %c0_6 = arith.constant 0 : index
    %31 = vector.load %arg4[%c0_5, %c0_6] : memref<64x64xbf16, #tpu.memory_space<vmem>>, vector<64x64xbf16>
    %cst_7 = arith.constant dense<0.000000e+00> : vector<128x64xf32>
    %32 = tpu.matmul %30, %31, %cst_7 {dimension_numbers = #tpu.dot_dimension_numbers<[1], [0], [0], [1], [0, 0, 1, 1], [], []>} : vector<128x64xbf16>, vector<64x64xbf16>, vector<128x64xf32> -> vector<128x64xf32>
    %c0_8 = arith.constant 0 : index
    %c0_9 = arith.constant 0 : index
    %33 = vector.load %arg5[%c0_8, %c0_9] : memref<1x64xf32, #tpu.memory_space<vmem>>, vector<1x64xf32>
    %34 = vector.broadcast %33 : vector<1x64xf32> to vector<128x64xf32>
    %35 = arith.addf %32, %34 : vector<128x64xf32>
    %cst_10 = arith.constant 0.000000e+00 : f32
    %36 = vector.broadcast %cst_10 : f32 to vector<128x64xf32>
    %37 = arith.maximumf %35, %36 : vector<128x64xf32>
    %38 = arith.truncf %37 : vector<128x64xf32> to vector<128x64xbf16>
    %c0_11 = arith.constant 0 : index
    %c0_12 = arith.constant 0 : index
    %39 = vector.load %arg6[%c0_11, %c0_12] : memref<64x128xbf16, #tpu.memory_space<vmem>>, vector<64x128xbf16>
    %cst_13 = arith.constant dense<0.000000e+00> : vector<128x128xf32>
    %40 = tpu.matmul %38, %39, %cst_13 {dimension_numbers = #tpu.dot_dimension_numbers<[1], [0], [0], [1], [0, 0, 1, 1], [], []>} : vector<128x64xbf16>, vector<64x128xbf16>, vector<128x128xf32> -> vector<128x128xf32>
    %c0_14 = arith.constant 0 : index
    %c0_15 = arith.constant 0 : index
    %41 = vector.load %arg7[%c0_14, %c0_15] : memref<1x128xf32, #tpu.memory_space<vmem>>, vector<1x128xf32>
    %42 = vector.broadcast %41 : vector<1x128xf32> to vector<128x128xf32>
    %43 = arith.addf %40, %42 : vector<128x128xf32>
    %c0_16 = arith.constant 0 : index
    %c0_17 = arith.constant 0 : index
    %44 = vector.load %arg8[%c0_16, %c0_17] : memref<128x128xf32, #tpu.memory_space<vmem>>, vector<128x128xf32>
    tpu.vector_store %arg8[%c0_16, %c0_17], %43 {strides = array<i32>} : memref<128x128xf32, #tpu.memory_space<vmem>>, vector<128x128xf32>,
    return
  }
  func.func @transform_0(%arg0: i32) -> (i32, i32) {
    %c0_i32 = arith.constant 0 : i32
    %c0_i32_0 = arith.constant 0 : i32
    return %arg0, %c0_i32 : i32, i32
  }
  func.func @transform_1(%arg0: i32) -> (i32, i32) {
    %c0_i32 = arith.constant 0 : i32
    %c0_i32_0 = arith.constant 0 : i32
    %c0_i32_1 = arith.constant 0 : i32
    return %c0_i32, %c0_i32_0 : i32, i32
  }
  func.func @transform_2(%arg0: i32) -> (i32, i32) {
    %c0_i32 = arith.constant 0 : i32
    %c0_i32_0 = arith.constant 0 : i32
    %c0_i32_1 = arith.constant 0 : i32
    return %c0_i32, %c0_i32_0 : i32, i32
  }
  func.func @transform_3(%arg0: i32) -> (i32, i32) {
    %c0_i32 = arith.constant 0 : i32
    %c0_i32_0 = arith.constant 0 : i32
    %c0_i32_1 = arith.constant 0 : i32
    return %c0_i32, %c0_i32_0 : i32, i32
  }
  func.func @transform_4(%arg0: i32) -> (i32, i32) {
    %c0_i32 = arith.constant 0 : i32
    %c0_i32_0 = arith.constant 0 : i32
    %c0_i32_1 = arith.constant 0 : i32
    return %c0_i32, %c0_i32_0 : i32, i32
  }
  func.func @transform_5(%arg0: i32) -> (i32, i32) {
    %c0_i32 = arith.constant 0 : i32
    %c0_i32_0 = arith.constant 0 : i32
    %c0_i32_1 = arith.constant 0 : i32
    return %c0_i32, %c0_i32_0 : i32, i32
  }
  func.func @transform_6(%arg0: i32) -> (i32, i32) {
    %c0_i32 = arith.constant 0 : i32
    %c0_i32_0 = arith.constant 0 : i32
    %c0_i32_1 = arith.constant 0 : i32
    return %c0_i32, %c0_i32_0 : i32, i32
  }
  func.func @transform_7(%arg0: i32) -> (i32, i32) {
    %c0_i32 = arith.constant 0 : i32
    %c0_i32_0 = arith.constant 0 : i32
    return %arg0, %c0_i32 : i32, i32
  }
}

</mosaic_0001>

<llo_original>
// kernel: qnetwork_forward.1
$region0: #{qnetwork_forward.1}
  #allocation0 [shape = 'u32[]', space=smem, size = 0x4, offset = 0x4, fixed_abs, tag = 'smem constant byte address 0x4 - core index']
  #allocation1 [shape = 'u32[144,128]{1,0:T(1,128)}', space=vmem, size = 0x12000, scoped, tag = 'internal scratch']
  %s0 = inlined_call_operand.vmem [shape: f32[128,4], index: 0, kind: input, shape index: {}]
  %s1 = inlined_call_operand.vmem [shape: f32[4,64], index: 1, kind: input, shape index: {}]
  %s2 = inlined_call_operand.vmem [shape: f32[1,64], index: 2, kind: input, shape index: {}]
  %s3 = inlined_call_operand.vmem [shape: bf16[64,64], index: 3, kind: input, shape index: {}]
  %s4 = inlined_call_operand.vmem [shape: f32[1,64], index: 4, kind: input, shape index: {}]
  %s5 = inlined_call_operand.vmem [shape: bf16[64,128], index: 5, kind: input, shape index: {}]
  %s6 = inlined_call_operand.vmem [shape: f32[1,128], index: 6, kind: input, shape index: {}]
  %s7 = inlined_call_operand.vmem [shape: f32[128,128], index: 7, kind: output, shape index: {}]
  %s8 = sld [smem:[#allocation0]]
  $region38: #{qnetwork_forward.1} parent=0
    _
  %s10 = ssub.s32 1, %s8
  %s11 = scalar_select 0, %s10, %s8
  // Predicated region
  $region2: #{qnetwork_forward.1} parent=0 // pred_check
    _
  $region3: #{qnetwork_forward.1} parent=0 // pred_check_branch
    %13 = sbr.rel (0) target = $region5
  $region4: #{qnetwork_forward.1} parent=0 // pred_region
    _
  $region5: #{qnetwork_forward.1} parent=0 // pred_fallthru
    _
  // Predicated region
  $region6: #{qnetwork_forward.1} parent=0 // pred_check
    _
  $region7: #{qnetwork_forward.1} parent=0 // pred_check_branch
    %15 = sbr.rel (0) target = $region9
  $region8: #{qnetwork_forward.1} parent=0 // pred_region
    _
  $region9: #{qnetwork_forward.1} parent=0 // pred_fallthru
    _
  // Predicated region
  $region10: #{qnetwork_forward.1} parent=0 // pred_check
    _
  $region11: #{qnetwork_forward.1} parent=0 // pred_check_branch
    %17 = sbr.rel (0) target = $region13
  $region12: #{qnetwork_forward.1} parent=0 // pred_region
    _
  $region13: #{qnetwork_forward.1} parent=0 // pred_fallthru
    _
  // Predicated region
  $region14: #{qnetwork_forward.1} parent=0 // pred_check
    _
  $region15: #{qnetwork_forward.1} parent=0 // pred_check_branch
    %19 = sbr.rel (0) target = $region17
  $region16: #{qnetwork_forward.1} parent=0 // pred_region
    _
  $region17: #{qnetwork_forward.1} parent=0 // pred_fallthru
    _
  // Predicated region
  $region18: #{qnetwork_forward.1} parent=0 // pred_check
    _
  $region19: #{qnetwork_forward.1} parent=0 // pred_check_branch
    %21 = sbr.rel (0) target = $region21
  $region20: #{qnetwork_forward.1} parent=0 // pred_region
    _
  $region21: #{qnetwork_forward.1} parent=0 // pred_fallthru
    _
  // Predicated region
  $region22: #{qnetwork_forward.1} parent=0 // pred_check
    _
  $region23: #{qnetwork_forward.1} parent=0 // pred_check_branch
    %23 = sbr.rel (0) target = $region25
  $region24: #{qnetwork_forward.1} parent=0 // pred_region
    _
  $region25: #{qnetwork_forward.1} parent=0 // pred_fallthru
    _
  // Predicated region
  $region26: #{qnetwork_forward.1} parent=0 // pred_check
    _
  $region27: #{qnetwork_forward.1} parent=0 // pred_check_branch
    %25 = sbr.rel (0) target = $region29
  $region28: #{qnetwork_forward.1} parent=0 // pred_region
    _
  $region29: #{qnetwork_forward.1} parent=0 // pred_fallthru
    _
  %v27 = vld [vmem:[%s0] sm:$0xff]
  %v28 = vld [vmem:[%s0 + $0x8] sm:$0xff]
  %v29 = vld [vmem:[%s0 + $0x10] sm:$0xff]
  %v30 = vld [vmem:[%s0 + $0x18] sm:$0xff]
  %v31 = vld [vmem:[%s0 + $0x20] sm:$0xff]
  %v32 = vld [vmem:[%s0 + $0x28] sm:$0xff]
  %v33 = vld [vmem:[%s0 + $0x30] sm:$0xff]
  %v34 = vld [vmem:[%s0 + $0x38] sm:$0xff]
  %v35 = vld [vmem:[%s0 + $0x40] sm:$0xff]
  %v36 = vld [vmem:[%s0 + $0x48] sm:$0xff]
  %v37 = vld [vmem:[%s0 + $0x50] sm:$0xff]
  %v38 = vld [vmem:[%s0 + $0x58] sm:$0xff]
  %v39 = vld [vmem:[%s0 + $0x60] sm:$0xff]
  %v40 = vld [vmem:[%s0 + $0x68] sm:$0xff]
  %v41 = vld [vmem:[%s0 + $0x70] sm:$0xff]
  %v42 = vld [vmem:[%s0 + $0x78] sm:$0xff]
  %v43 = vld [vmem:[%s1] sm:$0xf]
  %v44 = vld [vmem:[%s2] sm:$0x1]
  %46 = vset.pattern.permute.xlu0 0
  %47 = vperm.xlu0 %46, %v27
  %v48 = vpop.permute.xlu0 %47
  %51 = vset.pattern.permute.xlu0 0
  %52 = vperm.xlu0 %51, %v28
  %v53 = vpop.permute.xlu0 %52
  %56 = vset.pattern.permute.xlu0 0
  %57 = vperm.xlu0 %56, %v29
  %v58 = vpop.permute.xlu0 %57
  %61 = vset.pattern.permute.xlu0 0
  %62 = vperm.xlu0 %61, %v30
  %v63 = vpop.permute.xlu0 %62
  %66 = vset.pattern.permute.xlu0 0
  %67 = vperm.xlu0 %66, %v31
  %v68 = vpop.permute.xlu0 %67
  %71 = vset.pattern.permute.xlu0 0
  %72 = vperm.xlu0 %71, %v32
  %v73 = vpop.permute.xlu0 %72
  %76 = vset.pattern.permute.xlu0 0
  %77 = vperm.xlu0 %76, %v33
  %v78 = vpop.permute.xlu0 %77
  %81 = vset.pattern.permute.xlu0 0
  %82 = vperm.xlu0 %81, %v34
  %v83 = vpop.permute.xlu0 %82
  %86 = vset.pattern.permute.xlu0 0
  %87 = vperm.xlu0 %86, %v35
  %v88 = vpop.permute.xlu0 %87
  %91 = vset.pattern.permute.xlu0 0
  %92 = vperm.xlu0 %91, %v36
  %v93 = vpop.permute.xlu0 %92
  %96 = vset.pattern.permute.xlu0 0
  %97 = vperm.xlu0 %96, %v37
  %v98 = vpop.permute.xlu0 %97
  %101 = vset.pattern.permute.xlu0 0
  %102 = vperm.xlu0 %101, %v38
  %v103 = vpop.permute.xlu0 %102
  %106 = vset.pattern.permute.xlu0 0
  %107 = vperm.xlu0 %106, %v39
  %v108 = vpop.permute.xlu0 %107
  %111 = vset.pattern.permute.xlu0 0
  %112 = vperm.xlu0 %111, %v40
  %v113 = vpop.permute.xlu0 %112
  %116 = vset.pattern.permute.xlu0 0
  %117 = vperm.xlu0 %116, %v41
  %v118 = vpop.permute.xlu0 %117
  %121 = vset.pattern.permute.xlu0 0
  %122 = vperm.xlu0 %121, %v42
  %v123 = vpop.permute.xlu0 %122
  %v125 = vlaneseq
  %v126 = vshrl.u32 %v125, 7
  %v127 = vsub.s32 0, %v126
  %v128 = vrot.slane %v43, %v127
  %v129 = vmul.f32 %v48, %v128
  %v130 = vmul.f32 %v53, %v128
  %v131 = vmul.f32 %v58, %v128
  %v132 = vmul.f32 %v63, %v128
  %v133 = vmul.f32 %v68, %v128
  %v134 = vmul.f32 %v73, %v128
  %v135 = vmul.f32 %v78, %v128
  %v136 = vmul.f32 %v83, %v128
  %v137 = vmul.f32 %v88, %v128
  %v138 = vmul.f32 %v93, %v128
  %v139 = vmul.f32 %v98, %v128
  %v140 = vmul.f32 %v103, %v128
  %v141 = vmul.f32 %v108, %v128
  %v142 = vmul.f32 %v113, %v128
  %v143 = vmul.f32 %v118, %v128
  %v144 = vmul.f32 %v123, %v128
  %v146 = vlaneseq
  %v147 = vshrl.u32 %v146, 7
  %v148 = vsub.s32 0, %v147
  %v149 = vrot.slane %v44, %v148
  %v151 = vadd.f32 %v149, %v129
  %v152 = vadd.f32 %v149, %v130
  %v153 = vadd.f32 %v149, %v131
  %v154 = vadd.f32 %v149, %v132
  %v155 = vadd.f32 %v149, %v133
  %v156 = vadd.f32 %v149, %v134
  %v157 = vadd.f32 %v149, %v135
  %v158 = vadd.f32 %v149, %v136
  %v159 = vadd.f32 %v149, %v137
  %v160 = vadd.f32 %v149, %v138
  %v161 = vadd.f32 %v149, %v139
  %v162 = vadd.f32 %v149, %v140
  %v163 = vadd.f32 %v149, %v141
  %v164 = vadd.f32 %v149, %v142
  %v165 = vadd.f32 %v149, %v143
  %v166 = vadd.f32 %v149, %v144
  %167 = vset.pattern.permute.xlu0 1
  %168 = vperm.xlu0 %167, %v27
  %v169 = vpop.permute.xlu0 %168
  %171 = vset.pattern.permute.xlu0 1
  %172 = vperm.xlu0 %171, %v28
  %v173 = vpop.permute.xlu0 %172
  %175 = vset.pattern.permute.xlu0 1
  %176 = vperm.xlu0 %175, %v29
  %v177 = vpop.permute.xlu0 %176
  %179 = vset.pattern.permute.xlu0 1
  %180 = vperm.xlu0 %179, %v30
  %v181 = vpop.permute.xlu0 %180
  %183 = vset.pattern.permute.xlu0 1
  %184 = vperm.xlu0 %183, %v31
  %v185 = vpop.permute.xlu0 %184
  %187 = vset.pattern.permute.xlu0 1
  %188 = vperm.xlu0 %187, %v32
  %v189 = vpop.permute.xlu0 %188
  %191 = vset.pattern.permute.xlu0 1
  %192 = vperm.xlu0 %191, %v33
  %v193 = vpop.permute.xlu0 %192
  %195 = vset.pattern.permute.xlu0 1
  %196 = vperm.xlu0 %195, %v34
  %v197 = vpop.permute.xlu0 %196
  %199 = vset.pattern.permute.xlu0 1
  %200 = vperm.xlu0 %199, %v35
  %v201 = vpop.permute.xlu0 %200
  %203 = vset.pattern.permute.xlu0 1
  %204 = vperm.xlu0 %203, %v36
  %v205 = vpop.permute.xlu0 %204
  %207 = vset.pattern.permute.xlu0 1
  %208 = vperm.xlu0 %207, %v37
  %v209 = vpop.permute.xlu0 %208
  %211 = vset.pattern.permute.xlu0 1
  %212 = vperm.xlu0 %211, %v38
  %v213 = vpop.permute.xlu0 %212
  %215 = vset.pattern.permute.xlu0 1
  %216 = vperm.xlu0 %215, %v39
  %v217 = vpop.permute.xlu0 %216
  %219 = vset.pattern.permute.xlu0 1
  %220 = vperm.xlu0 %219, %v40
  %v221 = vpop.permute.xlu0 %220
  %223 = vset.pattern.permute.xlu0 1
  %224 = vperm.xlu0 %223, %v41
  %v225 = vpop.permute.xlu0 %224
  %227 = vset.pattern.permute.xlu0 1
  %228 = vperm.xlu0 %227, %v42
  %v229 = vpop.permute.xlu0 %228
  %v231 = vlaneseq
  %v232 = vshrl.u32 %v231, 7
  %v233 = vsub.s32 1, %v232
  %v234 = vrot.slane %v43, %v233
  %v235 = vmul.f32 %v169, %v234
  %v236 = vmul.f32 %v173, %v234
  %v237 = vmul.f32 %v177, %v234
  %v238 = vmul.f32 %v181, %v234
  %v239 = vmul.f32 %v185, %v234
  %v240 = vmul.f32 %v189, %v234
  %v241 = vmul.f32 %v193, %v234
  %v242 = vmul.f32 %v197, %v234
  %v243 = vmul.f32 %v201, %v234
  %v244 = vmul.f32 %v205, %v234
  %v245 = vmul.f32 %v209, %v234
  %v246 = vmul.f32 %v213, %v234
  %v247 = vmul.f32 %v217, %v234
  %v248 = vmul.f32 %v221, %v234
  %v249 = vmul.f32 %v225, %v234
  %v250 = vmul.f32 %v229, %v234
  %v251 = vadd.f32 %v151, %v235
  %v252 = vadd.f32 %v152, %v236
  %v253 = vadd.f32 %v153, %v237
  %v254 = vadd.f32 %v154, %v238
  %v255 = vadd.f32 %v155, %v239
  %v256 = vadd.f32 %v156, %v240
  %v257 = vadd.f32 %v157, %v241
  %v258 = vadd.f32 %v158, %v242
  %v259 = vadd.f32 %v159, %v243
  %v260 = vadd.f32 %v160, %v244
  %v261 = vadd.f32 %v161, %v245
  %v262 = vadd.f32 %v162, %v246
  %v263 = vadd.f32 %v163, %v247
  %v264 = vadd.f32 %v164, %v248
  %v265 = vadd.f32 %v165, %v249
  %v266 = vadd.f32 %v166, %v250
  %267 = vset.pattern.permute.xlu0 2
  %268 = vperm.xlu0 %267, %v27
  %v269 = vpop.permute.xlu0 %268
  %271 = vset.pattern.permute.xlu0 2
  %272 = vperm.xlu0 %271, %v28
  %v273 = vpop.permute.xlu0 %272
  %275 = vset.pattern.permute.xlu0 2
  %276 = vperm.xlu0 %275, %v29
  %v277 = vpop.permute.xlu0 %276
  %279 = vset.pattern.permute.xlu0 2
  %280 = vperm.xlu0 %279, %v30
  %v281 = vpop.permute.xlu0 %280
  %283 = vset.pattern.permute.xlu0 2
  %284 = vperm.xlu0 %283, %v31
  %v285 = vpop.permute.xlu0 %284
  %287 = vset.pattern.permute.xlu0 2
  %288 = vperm.xlu0 %287, %v32
  %v289 = vpop.permute.xlu0 %288
  %291 = vset.pattern.permute.xlu0 2
  %292 = vperm.xlu0 %291, %v33
  %v293 = vpop.permute.xlu0 %292
  %295 = vset.pattern.permute.xlu0 2
  %296 = vperm.xlu0 %295, %v34
  %v297 = vpop.permute.xlu0 %296
  %299 = vset.pattern.permute.xlu0 2
  %300 = vperm.xlu0 %299, %v35
  %v301 = vpop.permute.xlu0 %300
  %303 = vset.pattern.permute.xlu0 2
  %304 = vperm.xlu0 %303, %v36
  %v305 = vpop.permute.xlu0 %304
  %307 = vset.pattern.permute.xlu0 2
  %308 = vperm.xlu0 %307, %v37
  %v309 = vpop.permute.xlu0 %308
  %311 = vset.pattern.permute.xlu0 2
  %312 = vperm.xlu0 %311, %v38
  %v313 = vpop.permute.xlu0 %312
  %315 = vset.pattern.permute.xlu0 2
  %316 = vperm.xlu0 %315, %v39
  %v317 = vpop.permute.xlu0 %316
  %319 = vset.pattern.permute.xlu0 2
  %320 = vperm.xlu0 %319, %v40
  %v321 = vpop.permute.xlu0 %320
  %323 = vset.pattern.permute.xlu0 2
  %324 = vperm.xlu0 %323, %v41
  %v325 = vpop.permute.xlu0 %324
  %327 = vset.pattern.permute.xlu0 2
  %328 = vperm.xlu0 %327, %v42
  %v329 = vpop.permute.xlu0 %328
  %v331 = vlaneseq
  %v332 = vshrl.u32 %v331, 7
  %v333 = vsub.s32 2, %v332
  %v334 = vrot.slane %v43, %v333
  %v335 = vmul.f32 %v269, %v334
  %v336 = vmul.f32 %v273, %v334
  %v337 = vmul.f32 %v277, %v334
  %v338 = vmul.f32 %v281, %v334
  %v339 = vmul.f32 %v285, %v334
  %v340 = vmul.f32 %v289, %v334
  %v341 = vmul.f32 %v293, %v334
  %v342 = vmul.f32 %v297, %v334
  %v343 = vmul.f32 %v301, %v334
  %v344 = vmul.f32 %v305, %v334
  %v345 = vmul.f32 %v309, %v334
  %v346 = vmul.f32 %v313, %v334
  %v347 = vmul.f32 %v317, %v334
  %v348 = vmul.f32 %v321, %v334
  %v349 = vmul.f32 %v325, %v334
  %v350 = vmul.f32 %v329, %v334
  %v351 = vadd.f32 %v251, %v335
  %v352 = vadd.f32 %v252, %v336
  %v353 = vadd.f32 %v253, %v337
  %v354 = vadd.f32 %v254, %v338
  %v355 = vadd.f32 %v255, %v339
  %v356 = vadd.f32 %v256, %v340
  %v357 = vadd.f32 %v257, %v341
  %v358 = vadd.f32 %v258, %v342
  %v359 = vadd.f32 %v259, %v343
  %v360 = vadd.f32 %v260, %v344
  %v361 = vadd.f32 %v261, %v345
  %v362 = vadd.f32 %v262, %v346
  %v363 = vadd.f32 %v263, %v347
  %v364 = vadd.f32 %v264, %v348
  %v365 = vadd.f32 %v265, %v349
  %v366 = vadd.f32 %v266, %v350
  %367 = vset.pattern.permute.xlu0 3
  %368 = vperm.xlu0 %367, %v27
  %v369 = vpop.permute.xlu0 %368
  %371 = vset.pattern.permute.xlu0 3
  %372 = vperm.xlu0 %371, %v28
  %v373 = vpop.permute.xlu0 %372
  %375 = vset.pattern.permute.xlu0 3
  %376 = vperm.xlu0 %375, %v29
  %v377 = vpop.permute.xlu0 %376
  %379 = vset.pattern.permute.xlu0 3
  %380 = vperm.xlu0 %379, %v30
  %v381 = vpop.permute.xlu0 %380
  %383 = vset.pattern.permute.xlu0 3
  %384 = vperm.xlu0 %383, %v31
  %v385 = vpop.permute.xlu0 %384
  %387 = vset.pattern.permute.xlu0 3
  %388 = vperm.xlu0 %387, %v32
  %v389 = vpop.permute.xlu0 %388
  %391 = vset.pattern.permute.xlu0 3
  %392 = vperm.xlu0 %391, %v33
  %v393 = vpop.permute.xlu0 %392
  %395 = vset.pattern.permute.xlu0 3
  %396 = vperm.xlu0 %395, %v34
  %v397 = vpop.permute.xlu0 %396
  %399 = vset.pattern.permute.xlu0 3
  %400 = vperm.xlu0 %399, %v35
  %v401 = vpop.permute.xlu0 %400
  %403 = vset.pattern.permute.xlu0 3
  %404 = vperm.xlu0 %403, %v36
  %v405 = vpop.permute.xlu0 %404
  %407 = vset.pattern.permute.xlu0 3
  %408 = vperm.xlu0 %407, %v37
  %v409 = vpop.permute.xlu0 %408
  %411 = vset.pattern.permute.xlu0 3
  %412 = vperm.xlu0 %411, %v38
  %v413 = vpop.permute.xlu0 %412
  %415 = vset.pattern.permute.xlu0 3
  %416 = vperm.xlu0 %415, %v39
  %v417 = vpop.permute.xlu0 %416
  %419 = vset.pattern.permute.xlu0 3
  %420 = vperm.xlu0 %419, %v40
  %v421 = vpop.permute.xlu0 %420
  %423 = vset.pattern.permute.xlu0 3
  %424 = vperm.xlu0 %423, %v41
  %v425 = vpop.permute.xlu0 %424
  %427 = vset.pattern.permute.xlu0 3
  %428 = vperm.xlu0 %427, %v42
  %v429 = vpop.permute.xlu0 %428
  %v431 = vlaneseq
  %v432 = vshrl.u32 %v431, 7
  %v433 = vsub.s32 3, %v432
  %v434 = vrot.slane %v43, %v433
  %v435 = vmul.f32 %v369, %v434
  %v436 = vmul.f32 %v373, %v434
  %v437 = vmul.f32 %v377, %v434
  %v438 = vmul.f32 %v381, %v434
  %v439 = vmul.f32 %v385, %v434
  %v440 = vmul.f32 %v389, %v434
  %v441 = vmul.f32 %v393, %v434
  %v442 = vmul.f32 %v397, %v434
  %v443 = vmul.f32 %v401, %v434
  %v444 = vmul.f32 %v405, %v434
  %v445 = vmul.f32 %v409, %v434
  %v446 = vmul.f32 %v413, %v434
  %v447 = vmul.f32 %v417, %v434
  %v448 = vmul.f32 %v421, %v434
  %v449 = vmul.f32 %v425, %v434
  %v450 = vmul.f32 %v429, %v434
  %v451 = vadd.f32 %v351, %v435
  %v452 = vadd.f32 %v352, %v436
  %v453 = vadd.f32 %v353, %v437
  %v454 = vadd.f32 %v354, %v438
  %v455 = vadd.f32 %v355, %v439
  %v456 = vadd.f32 %v356, %v440
  %v457 = vadd.f32 %v357, %v441
  %v458 = vadd.f32 %v358, %v442
  %v459 = vadd.f32 %v359, %v443
  %v460 = vadd.f32 %v360, %v444
  %v461 = vadd.f32 %v361, %v445
  %v462 = vadd.f32 %v362, %v446
  %v463 = vadd.f32 %v363, %v447
  %v464 = vadd.f32 %v364, %v448
  %v465 = vadd.f32 %v365, %v449
  %v466 = vadd.f32 %v366, %v450
  %v467 = vmax.f32 %v451, 0.0
  %v468 = vmax.f32 %v452, 0.0
  %v469 = vmax.f32 %v453, 0.0
  %v470 = vmax.f32 %v454, 0.0
  %v471 = vmax.f32 %v455, 0.0
  %v472 = vmax.f32 %v456, 0.0
  %v473 = vmax.f32 %v457, 0.0
  %v474 = vmax.f32 %v458, 0.0
  %v475 = vmax.f32 %v459, 0.0
  %v476 = vmax.f32 %v460, 0.0
  %v477 = vmax.f32 %v461, 0.0
  %v478 = vmax.f32 %v462, 0.0
  %v479 = vmax.f32 %v463, 0.0
  %v480 = vmax.f32 %v464, 0.0
  %v481 = vmax.f32 %v465, 0.0
  %v482 = vmax.f32 %v466, 0.0
  %v483 = vpack.c.bf16 %v468, %v467
  %v484 = vpack.c.bf16 %v470, %v469
  %v485 = vpack.c.bf16 %v472, %v471
  %v486 = vpack.c.bf16 %v474, %v473
  %v487 = vpack.c.bf16 %v476, %v475
  %v488 = vpack.c.bf16 %v478, %v477
  %v489 = vpack.c.bf16 %v480, %v479
  %v490 = vpack.c.bf16 %v482, %v481
  %v491 = vld [vmem:[%s3] sm:$0xf]
  %v492 = vld [vmem:[%s3 + $0x4] sm:$0xf]
  %v493 = vld [vmem:[%s3 + $0x8] sm:$0xf]
  %v494 = vld [vmem:[%s3 + $0xc] sm:$0xf]
  %v495 = vld [vmem:[%s3 + $0x10] sm:$0xf]
  %v496 = vld [vmem:[%s3 + $0x14] sm:$0xf]
  %v497 = vld [vmem:[%s3 + $0x18] sm:$0xf]
  %v498 = vld [vmem:[%s3 + $0x1c] sm:$0xf]
  %v499 = vld [vmem:[%s4] sm:$0x1]
  %v501 = vlaneseq
  %v502 = vshrl.u32 %v501, 7
  %v503 = vsub.s32 0, %v502
  %v504 = vrot.slane %v499, %v503
  %v514 = vunpack.c.l.b16 %v491
  %v515 = vunpack.c.l.b16 %v492
  %v516 = vunpack.c.l.b16 %v493
  %v517 = vunpack.c.l.b16 %v494
  %v518 = vunpack.c.l.b16 %v495
  %v519 = vunpack.c.l.b16 %v496
  %v520 = vunpack.c.l.b16 %v497
  %v521 = vunpack.c.l.b16 %v498
  %v522 = vpack.c.b16 %v515, %v514
  %v523 = vpack.c.b16 %v517, %v516
  %v524 = vpack.c.b16 %v519, %v518
  %v525 = vpack.c.b16 %v521, %v520
  %vm530 = vcmask 523264
  %v532 = vsel %vm530, %v483, 0
  %v535 = vsel %vm530, %v484, 0
  %v538 = vsel %vm530, %v485, 0
  %v541 = vsel %vm530, %v486, 0
  %v544 = vsel %vm530, %v487, 0
  %v547 = vsel %vm530, %v488, 0
  %v550 = vsel %vm530, %v489, 0
  %v553 = vsel %vm530, %v490, 0
  %555 = vmatprep.subr.bf16.mxu0 0
  %556 = vmatpush1.bf16.msra.mxu0 %v522
  %557 = vmatprep.subr.bf16.mxu0 0
  %558 = vmatpush1.bf16.msra.mxu0 %v523
  %559 = vmatprep.subr.bf16.mxu0 0
  %560 = vmatpush1.bf16.msra.mxu0 %v524
  %561 = vmatprep.subr.bf16.mxu0 0
  %562 = vmatpush1.bf16.msra.mxu0 %v525
  %563 = vmatprep.subr.bf16.mxu0 0
  %564 = vmatpush1.bf16.msra.mxu0 0
  %565 = vmatprep.subr.bf16.mxu0 0
  %566 = vmatpush1.bf16.msra.mxu0 0
  %567 = vmatprep.subr.bf16.mxu0 0
  %568 = vmatpush1.bf16.msra.mxu0 0
  %569 = vmatprep.subr.bf16.mxu0 0
  %570 = vmatpush1.bf16.msra.mxu0 0
  %571 = vmatprep.subr.bf16.mxu0 0
  %572 = vmatpush1.bf16.msra.mxu0 0
  %573 = vmatprep.subr.bf16.mxu0 0
  %574 = vmatpush1.bf16.msra.mxu0 0
  %575 = vmatprep.subr.bf16.mxu0 0
  %576 = vmatpush1.bf16.msra.mxu0 0
  %577 = vmatprep.subr.bf16.mxu0 0
  %578 = vmatpush1.bf16.msra.mxu0 0
  %579 = vmatprep.subr.bf16.mxu0 0
  %580 = vmatpush1.bf16.msra.mxu0 0
  %581 = vmatprep.subr.bf16.mxu0 0
  %582 = vmatpush1.bf16.msra.mxu0 0
  %583 = vmatprep.subr.bf16.mxu0 0
  %584 = vmatpush1.bf16.msra.mxu0 0
  %585 = vmatprep.subr.bf16.mxu0 0
  %586 = vmatpush1.bf16.msra.mxu0 0
  %587 = vmatprep.mubr.bf16.mxu0 0
  %588 = vmatmul.mubr.bf16.gmra.mrb[0].mxu0 %v532
  %v589 = vpop.f32.mrb[0].mxu0
  %v590 = vadd.f32 %v504, %v589
  %v591 = vpop.f32.mrb[0].mxu0
  %v592 = vpop.f32.mrb[0].mxu0
  %v593 = vadd.f32 %v504, %v592
  %v594 = vpop.f32.mrb[0].mxu0
  %595 = vmatprep.mubr.bf16.mxu0 0
  %596 = vmatmul.mubr.bf16.gmra.mrb[0].mxu0 %v535
  %v597 = vpop.f32.mrb[0].mxu0
  %v598 = vadd.f32 %v504, %v597
  %v599 = vpop.f32.mrb[0].mxu0
  %v600 = vpop.f32.mrb[0].mxu0
  %v601 = vadd.f32 %v504, %v600
  %v602 = vpop.f32.mrb[0].mxu0
  %603 = vmatprep.mubr.bf16.mxu0 0
  %604 = vmatmul.mubr.bf16.gmra.mrb[0].mxu0 %v538
  %v605 = vpop.f32.mrb[0].mxu0
  %v606 = vadd.f32 %v504, %v605
  %v607 = vpop.f32.mrb[0].mxu0
  %v608 = vpop.f32.mrb[0].mxu0
  %v609 = vadd.f32 %v504, %v608
  %v610 = vpop.f32.mrb[0].mxu0
  %611 = vmatprep.mubr.bf16.mxu0 0
  %612 = vmatmul.mubr.bf16.gmra.mrb[0].mxu0 %v541
  %v613 = vpop.f32.mrb[0].mxu0
  %v614 = vadd.f32 %v504, %v613
  %v615 = vpop.f32.mrb[0].mxu0
  %v616 = vpop.f32.mrb[0].mxu0
  %v617 = vadd.f32 %v504, %v616
  %v618 = vpop.f32.mrb[0].mxu0
  %619 = vmatprep.mubr.bf16.mxu0 0
  %620 = vmatmul.mubr.bf16.gmra.mrb[0].mxu0 %v544
  %v621 = vpop.f32.mrb[0].mxu0
  %v622 = vadd.f32 %v504, %v621
  %v623 = vpop.f32.mrb[0].mxu0
  %v624 = vpop.f32.mrb[0].mxu0
  %v625 = vadd.f32 %v504, %v624
  %v626 = vpop.f32.mrb[0].mxu0
  %627 = vmatprep.mubr.bf16.mxu0 0
  %628 = vmatmul.mubr.bf16.gmra.mrb[0].mxu0 %v547
  %v629 = vpop.f32.mrb[0].mxu0
  %v630 = vadd.f32 %v504, %v629
  %v631 = vpop.f32.mrb[0].mxu0
  %v632 = vpop.f32.mrb[0].mxu0
  %v633 = vadd.f32 %v504, %v632
  %v634 = vpop.f32.mrb[0].mxu0
  %635 = vmatprep.mubr.bf16.mxu0 0
  %636 = vmatmul.mubr.bf16.gmra.mrb[0].mxu0 %v550
  %v637 = vpop.f32.mrb[0].mxu0
  %v638 = vadd.f32 %v504, %v637
  %v639 = vpop.f32.mrb[0].mxu0
  %v640 = vpop.f32.mrb[0].mxu0
  %v641 = vadd.f32 %v504, %v640
  %v642 = vpop.f32.mrb[0].mxu0
  %643 = vmatprep.mubr.bf16.mxu0 0
  %644 = vmatmul.mubr.bf16.gmra.mrb[0].mxu0 %v553
  %v645 = vpop.f32.mrb[0].mxu0
  %v646 = vadd.f32 %v504, %v645
  %v647 = vpop.f32.mrb[0].mxu0
  %v648 = vpop.f32.mrb[0].mxu0
  %v649 = vadd.f32 %v504, %v648
  %v650 = vpop.f32.mrb[0].mxu0
  %651 = vdwg.mxu0
  %v652 = vmax.f32 %v590, 0.0
  %v653 = vmax.f32 %v593, 0.0
  %v654 = vmax.f32 %v598, 0.0
  %v655 = vmax.f32 %v601, 0.0
  %v656 = vmax.f32 %v606, 0.0
  %v657 = vmax.f32 %v609, 0.0
  %v658 = vmax.f32 %v614, 0.0
  %v659 = vmax.f32 %v617, 0.0
  %v660 = vmax.f32 %v622, 0.0
  %v661 = vmax.f32 %v625, 0.0
  %v662 = vmax.f32 %v630, 0.0
  %v663 = vmax.f32 %v633, 0.0
  %v664 = vmax.f32 %v638, 0.0
  %v665 = vmax.f32 %v641, 0.0
  %v666 = vmax.f32 %v646, 0.0
  %v667 = vmax.f32 %v649, 0.0
  %v668 = vpack.c.bf16 %v653, %v652
  %v669 = vpack.c.bf16 %v655, %v654
  %v670 = vpack.c.bf16 %v657, %v656
  %v671 = vpack.c.bf16 %v659, %v658
  %v672 = vpack.c.bf16 %v661, %v660
  %v673 = vpack.c.bf16 %v663, %v662
  %v674 = vpack.c.bf16 %v665, %v664
  %v675 = vpack.c.bf16 %v667, %v666
  %v676 = vld [vmem:[%s5] sm:$0xf]
  %v677 = vld [vmem:[%s5 + $0x4] sm:$0xf]
  %v678 = vld [vmem:[%s5 + $0x8] sm:$0xf]
  %v679 = vld [vmem:[%s5 + $0xc] sm:$0xf]
  %v680 = vld [vmem:[%s5 + $0x10] sm:$0xf]
  %v681 = vld [vmem:[%s5 + $0x14] sm:$0xf]
  %v682 = vld [vmem:[%s5 + $0x18] sm:$0xf]
  %v683 = vld [vmem:[%s5 + $0x1c] sm:$0xf]
  %v684 = vld [vmem:[%s6] sm:$0x1]
  %v686 = vlaneseq
  %v687 = vshrl.u32 %v686, 7
  %v688 = vsub.s32 0, %v687
  %v689 = vrot.slane %v684, %v688
  %v699 = vunpack.c.l.b16 %v676
  %v700 = vunpack.c.l.b16 %v677
  %v701 = vunpack.c.l.b16 %v678
  %v702 = vunpack.c.l.b16 %v679
  %v703 = vunpack.c.l.b16 %v680
  %v704 = vunpack.c.l.b16 %v681
  %v705 = vunpack.c.l.b16 %v682
  %v706 = vunpack.c.l.b16 %v683
  %v707 = vpack.c.b16 %v700, %v699
  %v708 = vpack.c.b16 %v702, %v701
  %v709 = vpack.c.b16 %v704, %v703
  %v710 = vpack.c.b16 %v706, %v705
  %v716 = vsel %vm530, %v668, 0
  %v719 = vsel %vm530, %v669, 0
  %v722 = vsel %vm530, %v670, 0
  %v725 = vsel %vm530, %v671, 0
  %v728 = vsel %vm530, %v672, 0
  %v731 = vsel %vm530, %v673, 0
  %v734 = vsel %vm530, %v674, 0
  %v737 = vsel %vm530, %v675, 0
  %739 = vmatprep.subr.bf16.mxu0 0
  %740 = vmatpush1.bf16.msra.mxu0 %v707
  %741 = vmatprep.subr.bf16.mxu0 0
  %742 = vmatpush1.bf16.msra.mxu0 %v708
  %743 = vmatprep.subr.bf16.mxu0 0
  %744 = vmatpush1.bf16.msra.mxu0 %v709
  %745 = vmatprep.subr.bf16.mxu0 0
  %746 = vmatpush1.bf16.msra.mxu0 %v710
  %747 = vmatprep.subr.bf16.mxu0 0
  %748 = vmatpush1.bf16.msra.mxu0 0
  %749 = vmatprep.subr.bf16.mxu0 0
  %750 = vmatpush1.bf16.msra.mxu0 0
  %751 = vmatprep.subr.bf16.mxu0 0
  %752 = vmatpush1.bf16.msra.mxu0 0
  %753 = vmatprep.subr.bf16.mxu0 0
  %754 = vmatpush1.bf16.msra.mxu0 0
  %755 = vmatprep.subr.bf16.mxu0 0
  %756 = vmatpush1.bf16.msra.mxu0 0
  %757 = vmatprep.subr.bf16.mxu0 0
  %758 = vmatpush1.bf16.msra.mxu0 0
  %759 = vmatprep.subr.bf16.mxu0 0
  %760 = vmatpush1.bf16.msra.mxu0 0
  %761 = vmatprep.subr.bf16.mxu0 0
  %762 = vmatpush1.bf16.msra.mxu0 0
  %763 = vmatprep.subr.bf16.mxu0 0
  %764 = vmatpush1.bf16.msra.mxu0 0
  %765 = vmatprep.subr.bf16.mxu0 0
  %766 = vmatpush1.bf16.msra.mxu0 0
  %767 = vmatprep.subr.bf16.mxu0 0
  %768 = vmatpush1.bf16.msra.mxu0 0
  %769 = vmatprep.subr.bf16.mxu0 0
  %770 = vmatpush1.bf16.msra.mxu0 0
  %771 = vmatprep.mubr.bf16.mxu0 0
  %772 = vmatmul.mubr.bf16.gmra.mrb[0].mxu0 %v716
  %v773 = vpop.f32.mrb[0].mxu0
  %v774 = vadd.f32 %v689, %v773
  %v775 = vpop.f32.mrb[0].mxu0
  %v776 = vpop.f32.mrb[0].mxu0
  %v777 = vadd.f32 %v689, %v776
  %v778 = vpop.f32.mrb[0].mxu0
  %779 = vmatprep.mubr.bf16.mxu0 0
  %780 = vmatmul.mubr.bf16.gmra.mrb[0].mxu0 %v719
  %v781 = vpop.f32.mrb[0].mxu0
  %v782 = vadd.f32 %v689, %v781
  %v783 = vpop.f32.mrb[0].mxu0
  %v784 = vpop.f32.mrb[0].mxu0
  %v785 = vadd.f32 %v689, %v784
  %v786 = vpop.f32.mrb[0].mxu0
  %787 = vmatprep.mubr.bf16.mxu0 0
  %788 = vmatmul.mubr.bf16.gmra.mrb[0].mxu0 %v722
  %v789 = vpop.f32.mrb[0].mxu0
  %v790 = vadd.f32 %v689, %v789
  %v791 = vpop.f32.mrb[0].mxu0
  %v792 = vpop.f32.mrb[0].mxu0
  %v793 = vadd.f32 %v689, %v792
  %v794 = vpop.f32.mrb[0].mxu0
  %795 = vmatprep.mubr.bf16.mxu0 0
  %796 = vmatmul.mubr.bf16.gmra.mrb[0].mxu0 %v725
  %v797 = vpop.f32.mrb[0].mxu0
  %v798 = vadd.f32 %v689, %v797
  %v799 = vpop.f32.mrb[0].mxu0
  %v800 = vpop.f32.mrb[0].mxu0
  %v801 = vadd.f32 %v689, %v800
  %v802 = vpop.f32.mrb[0].mxu0
  %803 = vmatprep.mubr.bf16.mxu0 0
  %804 = vmatmul.mubr.bf16.gmra.mrb[0].mxu0 %v728
  %v805 = vpop.f32.mrb[0].mxu0
  %v806 = vadd.f32 %v689, %v805
  %v807 = vpop.f32.mrb[0].mxu0
  %v808 = vpop.f32.mrb[0].mxu0
  %v809 = vadd.f32 %v689, %v808
  %v810 = vpop.f32.mrb[0].mxu0
  %811 = vmatprep.mubr.bf16.mxu0 0
  %812 = vmatmul.mubr.bf16.gmra.mrb[0].mxu0 %v731
  %v813 = vpop.f32.mrb[0].mxu0
  %v814 = vadd.f32 %v689, %v813
  %v815 = vpop.f32.mrb[0].mxu0
  %v816 = vpop.f32.mrb[0].mxu0
  %v817 = vadd.f32 %v689, %v816
  %v818 = vpop.f32.mrb[0].mxu0
  %819 = vmatprep.mubr.bf16.mxu0 0
  %820 = vmatmul.mubr.bf16.gmra.mrb[0].mxu0 %v734
  %v821 = vpop.f32.mrb[0].mxu0
  %v822 = vadd.f32 %v689, %v821
  %v823 = vpop.f32.mrb[0].mxu0
  %v824 = vpop.f32.mrb[0].mxu0
  %v825 = vadd.f32 %v689, %v824
  %v826 = vpop.f32.mrb[0].mxu0
  %827 = vmatprep.mubr.bf16.mxu0 0
  %828 = vmatmul.mubr.bf16.gmra.mrb[0].mxu0 %v737
  %v829 = vpop.f32.mrb[0].mxu0
  %v830 = vadd.f32 %v689, %v829
  %v831 = vpop.f32.mrb[0].mxu0
  %v832 = vpop.f32.mrb[0].mxu0
  %v833 = vadd.f32 %v689, %v832
  %v834 = vpop.f32.mrb[0].mxu0
  %835 = vdwg.mxu0
  %836 = vst [vmem:[%s7] sm:$0xff] %v774
  %837 = vst [vmem:[%s7 + $0x8] sm:$0xff] %v777
  %838 = vst [vmem:[%s7 + $0x10] sm:$0xff] %v782
  %839 = vst [vmem:[%s7 + $0x18] sm:$0xff] %v785
  %840 = vst [vmem:[%s7 + $0x20] sm:$0xff] %v790
  %841 = vst [vmem:[%s7 + $0x28] sm:$0xff] %v793
  %842 = vst [vmem:[%s7 + $0x30] sm:$0xff] %v798
  %843 = vst [vmem:[%s7 + $0x38] sm:$0xff] %v801
  %844 = vst [vmem:[%s7 + $0x40] sm:$0xff] %v806
  %845 = vst [vmem:[%s7 + $0x48] sm:$0xff] %v809
  %846 = vst [vmem:[%s7 + $0x50] sm:$0xff] %v814
  %847 = vst [vmem:[%s7 + $0x58] sm:$0xff] %v817
  %848 = vst [vmem:[%s7 + $0x60] sm:$0xff] %v822
  %849 = vst [vmem:[%s7 + $0x68] sm:$0xff] %v825
  %850 = vst [vmem:[%s7 + $0x70] sm:$0xff] %v830
  %851 = vst [vmem:[%s7 + $0x78] sm:$0xff] %v833
  // Predicated region
  $region30: #{qnetwork_forward.1} parent=0 // pred_check
    _
  $region31: #{qnetwork_forward.1} parent=0 // pred_check_branch
    %853 = sbr.rel (0) target = $region33
  $region32: #{qnetwork_forward.1} parent=0 // pred_region
    _
  $region33: #{qnetwork_forward.1} parent=0 // pred_fallthru
    _
  // Predicated region
  $region34: #{qnetwork_forward.1} parent=0 // pred_check
    _
  $region35: #{qnetwork_forward.1} parent=0 // pred_check_branch
    %855 = sbr.rel (0) target = $region37
  $region36: #{qnetwork_forward.1} parent=0 // pred_region
    _
  $region37: #{qnetwork_forward.1} parent=0 // pred_fallthru
    _

</llo_original>
